<compile_context>
chip_gen: v5e
topology: v5e:2x2
jax: 0.10.0
libtpu: 0.0.40
codegen_flags: <defaults>
</compile_context>

<pallas_src>
import functools

import jax
import jax.numpy as jnp
from jax.experimental import pallas as pl
from jax.experimental.pallas import tpu as pltpu


def _round_up(x: int, m: int) -> int:
    return (x + m - 1) // m * m


def _round_down(x: int, m: int) -> int:
    return x // m * m


def _cdiv(a: int, b: int) -> int:
    return (a + b - 1) // b


def _block_loss(phi_blk, side_blk, emat_blk, *, t: int, k: int):
    """Element-wise weighted BCE-with-logits on one [bm, k*t] block.

    phi_blk:  [bm, k*t] logits (input dtype; cast to f32 here)
    side_blk: [bm, 2k]  f32: [:, :k] = idx_durations + group*t, [:, k:] = events
    emat_blk: [k, k*t]  bf16 block-diagonal 0/1 group-selection matrix
    """
    x = phi_blk.astype(jnp.float32)
    bm, lanes = x.shape
    lane = jax.lax.broadcasted_iota(jnp.int32, (bm, lanes), 1).astype(jnp.float32)

    idx_shift = side_blk[:, 0:k]          # [bm, k] f32
    ev = side_blk[:, k:2 * k]             # [bm, k] f32

    if k == 1:
        thr = idx_shift                   # [bm, 1] -> lane-broadcasts
        ev_full = ev                      # [bm, 1]
    else:
        # Expand per-(row, group) scalars to per-lane values with tiny bf16 MXU
        # matmuls (values <= 127 and {0,1} -> exact in bf16). e_mat is resident.
        e = emat_blk
        thr = jnp.dot(idx_shift.astype(jnp.bfloat16), e,
                      preferred_element_type=jnp.float32)
        ev_full = jnp.dot(ev.astype(jnp.bfloat16), e,
                          preferred_element_type=jnp.float32)

    in_surv = lane < thr                                       # y == 1
    relu_x = jnp.maximum(x, 0.0)
    softplus = jnp.log1p(jnp.exp(-jnp.abs(x)))                 # EUP slot
    base = jnp.where(in_surv, relu_x - x, relu_x) + softplus   # max(x,0) - x*y + sp
    c = jnp.where(in_surv, 1.0, ev_full)                       # y + (1-y)*events
    return c * base


def _bce_reduce_kernel(phi_ref, side_ref, emat_ref, out_ref, acc_ref, *,
                       t, k, m, bm, jp, need_mask):
    """Grid = (partial_groups, blocks_per_group); acc is a per-element VMEM
    accumulator resident across the inner ('arbitrary') axis."""
    j = pl.program_id(1)

    @pl.when(j == 0)
    def _init():
        acc_ref[...] = jnp.zeros_like(acc_ref)

    loss = _block_loss(phi_ref[...], side_ref[...], emat_ref[...], t=t, k=k)

    if need_mask:
        # Ragged tail / overhang blocks: zero rows past the valid folded-row
        # count so OOB (unspecified) input data never reaches the sum.
        blk = pl.program_id(0) * jp + j                 # unclamped logical block
        rows = blk * bm + jax.lax.broadcasted_iota(jnp.int32, loss.shape, 0)
        loss = jnp.where(rows < m, loss, 0.0)

    acc_ref[...] += loss                                # VPU-only steady state

    @pl.when(j == pl.num_programs(1) - 1)
    def _finalize():
        out_ref[...] = jnp.broadcast_to(jnp.sum(acc_ref[...]), out_ref.shape)


def _bce_none_kernel(phi_ref, side_ref, emat_ref, out_ref, *, t, k):
    out_ref[...] = _block_loss(phi_ref[...], side_ref[...], emat_ref[...],
                               t=t, k=k).astype(out_ref.dtype)


def bce_loss(phi, idx_durations, events, reduction: str = "mean", *,
             block_rows: int = 2048, vmem_budget_bytes: int = 8 * 1024 * 1024,
             num_partials: int = 2, out_dtype=None, validate: bool = False):
    """Pallas TPU implementation of DEGAS BCELoss.forward.

    jit-compatible (make `reduction` static) when validate=False.
    `out_dtype` only applies to reduction='none' (default float32, exact)."""
    if reduction not in ("mean", "sum", "none"):
        raise ValueError(f"Unsupported reduction: {reduction!r}")

    n, t = phi.shape

    if validate:
        # Optional: forces a device->host sync; keep out of jitted / hot paths.
        max_idx = int(jax.device_get(jnp.max(idx_durations)))
        if t <= max_idx:
            raise ValueError(
                "Network output `phi` is too small for `idx_durations`. "
                f"Need at least `phi.shape[1] = {max_idx + 1}`, "
                f"but got `phi.shape[1] = {t}`")

    # Lane-dense fold: pack k consecutive batch rows into the 128-lane axis.
    # k is reduced until it divides N exactly so the fold is a FREE row-major
    # reshape (no jnp.pad copy of phi).
    if t < 128 and 128 % t == 0:
        k = 128 // t
        while k > 1 and n % k:
            k //= 2
    else:
        k = 1
    m = n // k
    lanes = k * t

    # Merged side input: [m, 2k] = [idx + group*t | events]  (single DMA/block).
    idx_i32 = idx_durations.reshape(n).astype(jnp.int32)
    ev_f32 = events.reshape(n).astype(jnp.float32)
    offs = (jnp.arange(k, dtype=jnp.int32) * t)[None, :]
    idx_shift = (idx_i32.reshape(m, k) + offs).astype(jnp.float32)
    side = jnp.concatenate([idx_shift, ev_f32.reshape(m, k)], axis=1)

    # Constant group-selection matrix (bf16, fetched once, stays resident).
    g = jnp.arange(k, dtype=jnp.int32)[:, None]
    l = jnp.arange(lanes, dtype=jnp.int32)[None, :]
    e_mat = ((l >= g * t) & (l < (g + 1) * t)).astype(jnp.bfloat16)

    phi_f = phi.reshape(m, lanes)        # free reshape; input dtype preserved

    none_dtype = (jnp.dtype(out_dtype) if (reduction == "none" and out_dtype is not None)
                  else jnp.dtype(jnp.float32))
    in_item = jnp.dtype(phi.dtype).itemsize
    sub = 8
    if in_item == 2:
        sub = 16
    elif in_item == 1:
        sub = 32
    if reduction == "none" and none_dtype.itemsize == 2:
        sub = max(sub, 16)

    # Byte-capped block size (accounts for double buffering, lane-padded side
    # input, and the accumulator / output block).
    side_row_b = _round_up(2 * k, 128) * 4
    row_bytes = lanes * in_item * 2 + side_row_b * 2
    if reduction == "none":
        row_bytes += lanes * none_dtype.itemsize * 2
    else:
        row_bytes += lanes * 4
    bm_cap = max(sub, _round_down(vmem_budget_bytes // row_bytes, sub))
    desired = max(sub, _round_down(min(block_rows, bm_cap), sub))
    if m <= desired:
        bm, n_blocks = m, 1              # single block == full row extent
    else:
        bm, n_blocks = desired, _cdiv(m, desired)
    # TODO(synk): for extremely large T (a `sub`-row block exceeds the VMEM
    # budget) add a second grid axis tiling T instead of full rows.

    cost = pl.CostEstimate(
        flops=14 * n * t,
        transcendentals=2 * n * t,
        bytes_accessed=(n * t * in_item + side.size * 4 + e_mat.size * 2 +
                        (n * t * none_dtype.itemsize if reduction == "none"
                         else num_partials * 8 * 128 * 4)))

    if reduction == "none":
        out = pl.pallas_call(
            functools.partial(_bce_none_kernel, t=t, k=k),
            out_shape=jax.ShapeDtypeStruct((m, lanes), none_dtype),
            grid=(n_blocks,),
            in_specs=[
                pl.BlockSpec((bm, lanes), lambda i: (i, 0)),
                pl.BlockSpec((bm, 2 * k), lambda i: (i, 0)),
                pl.BlockSpec((k, lanes), lambda i: (0, 0)),
            ],
            out_specs=pl.BlockSpec((bm, lanes), lambda i: (i, 0)),
            compiler_params=pltpu.CompilerParams(
                dimension_semantics=("parallel",)),
            cost_estimate=cost,
        )(phi_f, side, e_mat)
        return out.reshape(n, t)         # free reshape, no slice copy

    # mean / sum: split blocks into `p_groups` super-groups ("parallel" axis,
    # sharded across TensorCores on v7x); inner axis is the accumulation loop.
    p_groups = max(1, min(num_partials, n_blocks))
    jp = _cdiv(n_blocks, p_groups)
    need_clamp = p_groups * jp != n_blocks
    need_mask = need_clamp or (m % bm != 0)

    if need_clamp:
        last = n_blocks - 1

        def row_block(p, j):
            return (jnp.minimum(p * jp + j, last), 0)
    else:
        def row_block(p, j):
            return (p * jp + j, 0)

    partials = pl.pallas_call(
        functools.partial(_bce_reduce_kernel, t=t, k=k, m=m, bm=bm, jp=jp,
                          need_mask=need_mask),
        out_shape=jax.ShapeDtypeStruct((p_groups, 8, 128), jnp.float32),
        grid=(p_groups, jp),
        in_specs=[
            pl.BlockSpec((bm, lanes), row_block),
            pl.BlockSpec((bm, 2 * k), row_block),
            pl.BlockSpec((k, lanes), lambda p, j: (0, 0)),
        ],
        out_specs=pl.BlockSpec((1, 8, 128), lambda p, j: (p, 0, 0)),
        scratch_shapes=[pltpu.VMEM((bm, lanes), jnp.float32)],
        compiler_params=pltpu.CompilerParams(
            dimension_semantics=("parallel", "arbitrary")),
        cost_estimate=cost,
    )(phi_f, side, e_mat)

    total = jnp.sum(partials[:, 0, 0])
    if reduction == "mean":
        return total / jnp.float32(n * t)
    return total


def _bce_loss_ref(phi, idx_durations, events, reduction="mean"):
    """Pure-JAX reference (mirrors the PyTorch forward)."""
    n, t = phi.shape
    y = (jnp.arange(t)[None, :] < idx_durations.reshape(-1, 1)).astype(jnp.float32)
    c = y + (1.0 - y) * events.astype(jnp.float32).reshape(-1, 1)
    x = phi.astype(jnp.float32)
    loss = c * (jnp.maximum(x, 0.0) - x * y + jnp.log1p(jnp.exp(-jnp.abs(x))))
    if reduction == "mean":
        return jnp.mean(loss)
    if reduction == "sum":
        return jnp.sum(loss)
    return loss


if __name__ == "__main__":
    key = jax.random.PRNGKey(0)
    k_phi, k_idx, k_ev = jax.random.split(key, 3)

    # Small shapes consistent with the module: batch=8, num discrete durations=32.
    N, T = 8, 32
    phi = jax.random.normal(k_phi, (N, T), dtype=jnp.float32)
    idx_durations = jax.random.randint(k_idx, (N,), 0, T, dtype=jnp.int32)
    events = jax.random.bernoulli(k_ev, 0.5, (N,)).astype(jnp.float32)

    out_mean = jax.block_until_ready(bce_loss(phi, idx_durations, events, "mean"))
    out_sum = jax.block_until_ready(bce_loss(phi, idx_durations, events, "sum"))
    out_none = jax.block_until_ready(bce_loss(phi, idx_durations, events, "none"))

    assert jnp.allclose(out_mean, _bce_loss_ref(phi, idx_durations, events, "mean"),
                        atol=1e-5, rtol=1e-5)
    assert jnp.allclose(out_sum, _bce_loss_ref(phi, idx_durations, events, "sum"),
                        atol=1e-4, rtol=1e-5)
    assert jnp.allclose(out_none, _bce_loss_ref(phi, idx_durations, events, "none"),
                        atol=1e-5, rtol=1e-5)

    # jit-compatibility (no host-sync check in the default path).
    jitted_mean = jax.jit(lambda p, i, e: bce_loss(p, i, e, "mean"))
    assert jnp.allclose(jax.block_until_ready(jitted_mean(phi, idx_durations, events)),
                        _bce_loss_ref(phi, idx_durations, events, "mean"),
                        atol=1e-5, rtol=1e-5)

    # Multi-block grid + ragged tail + 2-way partial reduction (mask/clamp path).
    N2, T2 = 600, 32
    phi2 = jax.random.normal(k_phi, (N2, T2), dtype=jnp.float32)
    idx2 = jax.random.randint(k_idx, (N2,), 0, T2, dtype=jnp.int32)
    ev2 = jax.random.bernoulli(k_ev, 0.5, (N2,)).astype(jnp.float32)
    assert jnp.allclose(
        jax.block_until_ready(bce_loss(phi2, idx2, ev2, "mean", block_rows=64)),
        _bce_loss_ref(phi2, idx2, ev2, "mean"), atol=1e-5, rtol=1e-5)
    assert jnp.allclose(
        jax.block_until_ready(bce_loss(phi2, idx2, ev2, "none", block_rows=64)),
        _bce_loss_ref(phi2, idx2, ev2, "none"), atol=1e-5, rtol=1e-5)

    # Odd batch (lane-fold disabled, k == 1 branch).
    N3, T3 = 7, 32
    phi3 = jax.random.normal(k_phi, (N3, T3), dtype=jnp.float32)
    idx3 = jax.random.randint(k_idx, (N3,), 0, T3, dtype=jnp.int32)
    ev3 = jax.random.bernoulli(k_ev, 0.5, (N3,)).astype(jnp.float32)
    assert jnp.allclose(
        jax.block_until_ready(bce_loss(phi3, idx3, ev3, "mean")),
        _bce_loss_ref(phi3, idx3, ev3, "mean"), atol=1e-5, rtol=1e-5)
    assert jnp.allclose(
        jax.block_until_ready(bce_loss(phi3, idx3, ev3, "none")),
        _bce_loss_ref(phi3, idx3, ev3, "none"), atol=1e-5, rtol=1e-5)

    print("KERNEL_OK")
</pallas_src>

<mosaic_0001>
module attributes {stable_mosaic.version = 11 : i64} {
  func.func @_bce_reduce_kernel(%arg0: i32, %arg1: i32, %arg2: memref<2x128xf32, #tpu.memory_space<vmem>>, %arg3: memref<2x8xf32, #tpu.memory_space<vmem>>, %arg4: memref<4x128xbf16, #tpu.memory_space<vmem>>, %arg5: memref<1x8x128xf32, #tpu.memory_space<vmem>>, %arg6: memref<2x128xf32, #tpu.memory_space<vmem>>) attributes {dimension_semantics = [#tpu.dimension_semantics<parallel>, #tpu.dimension_semantics<arbitrary>], iteration_bounds = array<i64: 1, 1>, scalar_prefetch = 0 : i64, scratch_operands = 1 : i64, tpu.core_type = #tpu.core_type<tc>, window_params = [{transform_indices = @transform_0, window_bounds = array<i64: 2, 128>}, {transform_indices = @transform_1, window_bounds = array<i64: 2, 8>}, {pipeline_mode = #tpu.pipeline_mode<synchronous>, transform_indices = @transform_2, window_bounds = array<i64: 4, 128>}, {transform_indices = @transform_3, window_bounds = array<i64: 1, 8, 128>}]} {
    %c0_i32 = arith.constant 0 : i32
    %0 = arith.cmpi eq, %arg1, %c0_i32 : i32
    %1 = arith.extui %0 : i1 to i32
    %c0_i32_0 = arith.constant 0 : i32
    %2 = arith.cmpi ne, %1, %c0_i32_0 : i32
    scf.if %2 {
      %cst_16 = arith.constant 0.000000e+00 : f32
      %34 = vector.broadcast %cst_16 : f32 to vector<2x128xf32>
      %c0_17 = arith.constant 0 : index
      %c0_18 = arith.constant 0 : index
      %35 = vector.load %arg6[%c0_17, %c0_18] : memref<2x128xf32, #tpu.memory_space<vmem>>, vector<2x128xf32>
      tpu.vector_store %arg6[%c0_17, %c0_18], %34 {strides = array<i32>} : memref<2x128xf32, #tpu.memory_space<vmem>>, vector<2x128xf32>,
    } else {
    }
    %c0 = arith.constant 0 : index
    %c0_1 = arith.constant 0 : index
    %3 = vector.load %arg2[%c0, %c0_1] : memref<2x128xf32, #tpu.memory_space<vmem>>, vector<2x128xf32>
    %c0_2 = arith.constant 0 : index
    %c0_3 = arith.constant 0 : index
    %4 = vector.load %arg3[%c0_2, %c0_3] : memref<2x8xf32, #tpu.memory_space<vmem>>, vector<2x8xf32>
    %c0_4 = arith.constant 0 : index
    %c0_5 = arith.constant 0 : index
    %5 = vector.load %arg4[%c0_4, %c0_5] : memref<4x128xbf16, #tpu.memory_space<vmem>>, vector<4x128xbf16>
    %6 = tpu.iota {dimensions = array<i32: 1>} : vector<2x128xi32>
    %7 = arith.sitofp %6 : vector<2x128xi32> to vector<2x128xf32>
    %8 = vector.extract_strided_slice %4 {offsets = [0, 0], sizes = [2, 4], strides = [1, 1]} : vector<2x8xf32> to vector<2x4xf32>
    %9 = vector.extract_strided_slice %4 {offsets = [0, 4], sizes = [2, 4], strides = [1, 1]} : vector<2x8xf32> to vector<2x4xf32>
    %10 = arith.truncf %8 : vector<2x4xf32> to vector<2x4xbf16>
    %cst = arith.constant dense<0.000000e+00> : vector<2x128xf32>
    %11 = tpu.matmul %10, %5, %cst {dimension_numbers = #tpu.dot_dimension_numbers<[1], [0], [0], [1], [0, 0, 1, 1], [], []>} : vector<2x4xbf16>, vector<4x128xbf16>, vector<2x128xf32> -> vector<2x128xf32>
    %12 = arith.truncf %9 : vector<2x4xf32> to vector<2x4xbf16>
    %cst_6 = arith.constant dense<0.000000e+00> : vector<2x128xf32>
    %13 = tpu.matmul %12, %5, %cst_6 {dimension_numbers = #tpu.dot_dimension_numbers<[1], [0], [0], [1], [0, 0, 1, 1], [], []>} : vector<2x4xbf16>, vector<4x128xbf16>, vector<2x128xf32> -> vector<2x128xf32>
    %14 = arith.cmpf olt, %7, %11 : vector<2x128xf32>
    %cst_7 = arith.constant 0.000000e+00 : f32
    %15 = vector.broadcast %cst_7 : f32 to vector<2x128xf32>
    %16 = arith.maximumf %3, %15 : vector<2x128xf32>
    %17 = math.absf %3 : vector<2x128xf32>
    %cst_8 = arith.constant 0.000000e+00 : f32
    %18 = vector.broadcast %cst_8 : f32 to vector<2x128xf32>
    %19 = arith.subf %18, %17 : vector<2x128xf32>
    %20 = math.exp %19 : vector<2x128xf32>
    %21 = math.log1p %20 : vector<2x128xf32>
    %22 = arith.subf %16, %3 : vector<2x128xf32>
    %23 = arith.select %14, %22, %16 : vector<2x128xi1>, vector<2x128xf32>
    %24 = arith.addf %23, %21 : vector<2x128xf32>
    %cst_9 = arith.constant 1.000000e+00 : f32
    %25 = vector.broadcast %cst_9 : f32 to vector<2x128xf32>
    %26 = arith.select %14, %25, %13 : vector<2x128xi1>, vector<2x128xf32>
    %27 = arith.mulf %26, %24 : vector<2x128xf32>
    %c0_10 = arith.constant 0 : index
    %c0_11 = arith.constant 0 : index
    %28 = vector.load %arg6[%c0_10, %c0_11] : memref<2x128xf32, #tpu.memory_space<vmem>>, vector<2x128xf32>
    %29 = arith.addf %28, %27 : vector<2x128xf32>
    %c0_12 = arith.constant 0 : index
    %c0_13 = arith.constant 0 : index
    %30 = vector.load %arg6[%c0_12, %c0_13] : memref<2x128xf32, #tpu.memory_space<vmem>>, vector<2x128xf32>
    tpu.vector_store %arg6[%c0_12, %c0_13], %29 {strides = array<i32>} : memref<2x128xf32, #tpu.memory_space<vmem>>, vector<2x128xf32>,
    %c0_i32_14 = arith.constant 0 : i32
    %31 = arith.cmpi eq, %arg1, %c0_i32_14 : i32
    %32 = arith.extui %31 : i1 to i32
    %c0_i32_15 = arith.constant 0 : i32
    %33 = arith.cmpi ne, %32, %c0_i32_15 : i32
    scf.if %33 {
      %c0_16 = arith.constant 0 : index
      %c0_17 = arith.constant 0 : index
      %34 = vector.load %arg6[%c0_16, %c0_17] : memref<2x128xf32, #tpu.memory_space<vmem>>, vector<2x128xf32>
      %35 = vector.shape_cast %34 : vector<2x128xf32> to vector<1x2x128xf32>
      %cst_18 = arith.constant dense<0.000000e+00> : vector<1xf32>
      %36 = vector.multi_reduction <add>, %35, %cst_18 [1, 2] : vector<1x2x128xf32> to vector<1xf32>
      %37 = vector.shape_cast %36 : vector<1xf32> to vector<1x1x1xf32>
      %38 = vector.extract %37[0, 0, 0] : f32 from vector<1x1x1xf32>
      %39 = vector.broadcast %38 : f32 to vector<1x8x128xf32>
      %c0_19 = arith.constant 0 : index
      %c0_20 = arith.constant 0 : index
      %c0_21 = arith.constant 0 : index
      %40 = vector.load %arg5[%c0_19, %c0_20, %c0_21] : memref<1x8x128xf32, #tpu.memory_space<vmem>>, vector<1x8x128xf32>
      tpu.vector_store %arg5[%c0_19, %c0_20, %c0_21], %39 {strides = array<i32>} : memref<1x8x128xf32, #tpu.memory_space<vmem>>, vector<1x8x128xf32>,
    } else {
    }
    return
  }
  func.func @transform_0(%arg0: i32, %arg1: i32) -> (i32, i32) {
    %c1_i32 = arith.constant 1 : i32
    %0 = arith.muli %arg0, %c1_i32 : i32
    %1 = arith.addi %0, %arg1 : i32
    %c0_i32 = arith.constant 0 : i32
    %c0_i32_0 = arith.constant 0 : i32
    return %1, %c0_i32 : i32, i32
  }
  func.func @transform_1(%arg0: i32, %arg1: i32) -> (i32, i32) {
    %c1_i32 = arith.constant 1 : i32
    %0 = arith.muli %arg0, %c1_i32 : i32
    %1 = arith.addi %0, %arg1 : i32
    %c0_i32 = arith.constant 0 : i32
    %c0_i32_0 = arith.constant 0 : i32
    return %1, %c0_i32 : i32, i32
  }
  func.func @transform_2(%arg0: i32, %arg1: i32) -> (i32, i32) {
    %c0_i32 = arith.constant 0 : i32
    %c0_i32_0 = arith.constant 0 : i32
    %c0_i32_1 = arith.constant 0 : i32
    return %c0_i32, %c0_i32_0 : i32, i32
  }
  func.func @transform_3(%arg0: i32, %arg1: i32) -> (i32, i32, i32) {
    %c0_i32 = arith.constant 0 : i32
    %c0_i32_0 = arith.constant 0 : i32
    %c0_i32_1 = arith.constant 0 : i32
    return %arg0, %c0_i32, %c0_i32_0 : i32, i32, i32
  }
}

</mosaic_0001>

<llo_original>
// kernel: tpu_custom_call.1
$region0: #{tpu_custom_call.1}
  #allocation0 [shape = 'u32[]', space=smem, size = 0x4, offset = 0x4, fixed_abs, tag = 'smem constant byte address 0x4 - core index']
  #allocation1 [shape = 'u32[72,128]{1,0:T(1,128)}', space=vmem, size = 0x9000, scoped, tag = 'internal scratch']
  #allocation2 [shape = 'f32[2,128]{1,0:T(2,128)}', space=vmem, size = 0x400, scoped, tag = 'scratch operand']
  %s0 = inlined_call_operand.hbm [shape: f32[2,128], index: 0, kind: input, shape index: {}]
  %s1 = inlined_call_operand.hbm [shape: f32[2,8], index: 1, kind: input, shape index: {}]
  %s2 = inlined_call_operand.hbm [shape: bf16[4,128], index: 2, kind: input, shape index: {}]
  %s3 = inlined_call_operand.hbm [shape: f32[1,8,128], index: 3, kind: output, shape index: {}]
  %s4 = sld [smem:[#allocation0]]
  $region42: #{tpu_custom_call.1} parent=0
    _
  %s6 = ssub.s32 1, %s4
  %s7 = scalar_select 0, %s6, %s4
  $region1: #{tpu_custom_call.1} parent=0
    #allocation3 [shape = 'u8[1024]{0}', space=vmem, size = 0x400, scoped, tag = 'input window, operand 0, single buffered']
    #allocation4 [shape = 's32[1]{0}', space=sflag, size = 0x4, scoped, tag = 'scoped memory for tpu_custom_call.1']
    #allocation5 [shape = 's32[1]{0}', space=sflag, size = 0x4, scoped, tag = 'scoped memory for tpu_custom_call.1']
    #allocation6 [shape = 'u8[1024]{0}', space=vmem, size = 0x400, scoped, tag = 'input window, operand 1, single buffered']
    #allocation7 [shape = 's32[1]{0}', space=sflag, size = 0x4, scoped, tag = 'scoped memory for tpu_custom_call.1']
    #allocation8 [shape = 'u8[1024]{0}', space=vmem, size = 0x400, scoped, tag = 'input window, operand 2, single buffered']
    #allocation9 [shape = 'u8[4096]{0}', space=vmem, size = 0x1000, scoped, tag = 'output window, operand 0, single buffered']
    %8 = vsyncpa [#allocation4], 0
    %9 = vsyncpa [#allocation7], 0
    %10 = vsyncpa [#allocation5], 0
    // Predicated region
    $region2: #{tpu_custom_call.1} parent=1 // pred_check
      _
    $region3: #{tpu_custom_call.1} parent=1 // pred_check_branch
      %12 = sbr.rel (0) target = $region5
    $region4: #{tpu_custom_call.1} parent=1 // pred_region
      %s13 = sadd.s32 0, 0
      %15 = vsyncadd [#allocation4], 0
      %s16 = smul.addr %s13, 2
      %s17 = scalar_lea.hbm %s0, %s16
      %s19 = sshll.u32 %s17, 4
      %s20 = int_to_ptr.hbm [resolvable:$true] %s19
      %s21 = sshll.u32 [#allocation3], 4
      %s22 = int_to_ptr.vmem [resolvable:$true] %s21
      %24 = dma.hbm_to_vmem [thread:$0]  %s20, 32, %s22, [#allocation4]
    $region5: #{tpu_custom_call.1} parent=1 // pred_fallthru
      _
    // Predicated region
    $region6: #{tpu_custom_call.1} parent=1 // pred_check
      _
    $region7: #{tpu_custom_call.1} parent=1 // pred_check_branch
      %26 = sbr.rel (0) target = $region9
    $region8: #{tpu_custom_call.1} parent=1 // pred_region
      %s27 = sadd.s32 0, 0
      %29 = vsyncadd [#allocation7], 0
      %s30 = smul.addr %s27, 2
      %s31 = scalar_lea.hbm %s1, %s30
      %s33 = sshll.u32 %s31, 4
      %s34 = int_to_ptr.hbm [resolvable:$true] %s33
      %s35 = sshll.u32 [#allocation6], 4
      %s36 = int_to_ptr.vmem [resolvable:$true] %s35
      %38 = dma.hbm_to_vmem [thread:$0]  %s34, 32, %s36, [#allocation7]
    $region9: #{tpu_custom_call.1} parent=1 // pred_fallthru
      _
    // Predicated region
    $region10: #{tpu_custom_call.1} parent=1 // pred_check
      _
    $region11: #{tpu_custom_call.1} parent=1 // pred_check_branch
      %40 = sbr.rel (0) target = $region13
    $region12: #{tpu_custom_call.1} parent=1 // pred_region
      %42 = vsyncadd [#allocation7], 0
      %s44 = sshll.u32 %s2, 4
      %s45 = int_to_ptr.hbm [resolvable:$true] %s44
      %s46 = sshll.u32 [#allocation8], 4
      %s47 = int_to_ptr.vmem [resolvable:$true] %s46
      %49 = dma.hbm_to_vmem [thread:$0]  %s45, 32, %s47, [#allocation7]
    $region13: #{tpu_custom_call.1} parent=1 // pred_fallthru
      _
    // Predicated region
    $region14: #{tpu_custom_call.1} parent=1 // pred_check
      _
    $region15: #{tpu_custom_call.1} parent=1 // pred_check_branch
      %51 = sbr.rel (0) target = $region17
    $region16: #{tpu_custom_call.1} parent=1 // pred_region
      %53 = dma.done [#allocation4], 32
    $region17: #{tpu_custom_call.1} parent=1 // pred_fallthru
      _
    // Predicated region
    $region18: #{tpu_custom_call.1} parent=1 // pred_check
      _
    $region19: #{tpu_custom_call.1} parent=1 // pred_check_branch
      %55 = sbr.rel (0) target = $region21
    $region20: #{tpu_custom_call.1} parent=1 // pred_region
      %57 = dma.done [#allocation7], 32
    $region21: #{tpu_custom_call.1} parent=1 // pred_fallthru
      _
    // Predicated region
    $region22: #{tpu_custom_call.1} parent=1 // pred_check
      _
    $region23: #{tpu_custom_call.1} parent=1 // pred_check_branch
      %59 = sbr.rel (0) target = $region25
    $region24: #{tpu_custom_call.1} parent=1 // pred_region
      %61 = dma.done [#allocation7], 32
    $region25: #{tpu_custom_call.1} parent=1 // pred_fallthru
      _
    %s62 = sadd.s32 0, 0
    %s63 = sadd.s32 0, 0
    %p65 = scmp.eq.s32.totalorder 0, 0
    // Predicated region
    $region26: #{tpu_custom_call.1} parent=1 // pred_check
      %p66 = pneg %p65
    $region27: #{tpu_custom_call.1} parent=1 // pred_check_branch
      %68 = sbr.rel (%p66) target = $region29
    $region28: #{tpu_custom_call.1} parent=1 // pred_region
      %69 = vst [vmem:[#allocation2] sm:$0x3] 0.0
    $region29: #{tpu_custom_call.1} parent=1 // pred_fallthru
      _
    %v70 = vld [vmem:[#allocation3] sm:$0x3]
    %v71 = vld [vmem:[#allocation6] sm:$0x3]
    %v72 = vld [vmem:[#allocation8] sm:$0x3]
    %v73 = vlaneseq
    %v74 = vand.u32 %v73, 127
    %v75 = vcvt.s32.f32 %v74
    %v76 = vpack.c.bf16 %v71, %v71
    %vm77 = vcmask 31744
    %v79 = vsel %vm77, %v76, 0
    %vm81 = vcmask 1041408
    %v83 = vsel %vm81, %v72, 0
    %85 = vmatpush.bf16.msra.mxu0 0
    %86 = vmatpush.bf16.msra.mxu0 0
    %87 = vmatpush.bf16.msra.mxu0 0
    %88 = vmatpush.bf16.msra.mxu0 0
    %89 = vmatpush.bf16.msra.mxu0 0
    %90 = vmatpush.bf16.msra.mxu0 0
    %91 = vmatpush.bf16.msra.mxu0 0
    %92 = vmatpush.bf16.msra.mxu0 %v83
    %93 = vmatmul.bf16.gmra.mxu0 %v79
    %v94 = vpop.f32.mrf.mxu0
    %v95 = vadd.f32 0.0, %v94
    %v96 = vpop.f32.mrf.mxu0
    %97 = vdwg.mxu0
    %99 = vrot.lane.b32.xlu0 %v76, 124
    %v100 = vpop.permute.xlu0 %99
    %v102 = vsel %vm77, %v100, 0
    %104 = vmatpush.bf16.msra.mxu0 0
    %105 = vmatpush.bf16.msra.mxu0 0
    %106 = vmatpush.bf16.msra.mxu0 0
    %107 = vmatpush.bf16.msra.mxu0 0
    %108 = vmatpush.bf16.msra.mxu0 0
    %109 = vmatpush.bf16.msra.mxu0 0
    %110 = vmatpush.bf16.msra.mxu0 0
    %111 = vmatpush.bf16.msra.mxu0 %v83
    %112 = vmatmul.bf16.gmra.mxu0 %v102
    %v113 = vpop.f32.mrf.mxu0
    %v114 = vadd.f32 0.0, %v113
    %v115 = vpop.f32.mrf.mxu0
    %116 = vdwg.mxu0
    %vm117 = vcmp.lt.f32.partialorder %v75, %v95
    %v118 = vmax.f32 %v70, 0.0
    %v119 = vand.u32 2147483647, %v70
    %v120 = vsub.f32 0.0, %v119
    %v121 = vmul.f32 %v120, 1.442695
    %v122 = vpow.pop %v121
    %v123 = vadd.f32 %v122, 1.0
    %v124 = vlog2.pop %v123
    %v125 = vmul.f32 %v124, 0.6931472
    %v126 = vmul.f32 -0.5, %v122
    %v127 = vadd.f32 %v126, 1.0
    %v128 = vmul.f32 %v127, %v122
    %v129 = vand.u32 2147483647, %v122
    %vm130 = vcmp.lt.f32.partialorder %v129, 0.0004427343
    %v131 = vsel %vm130, %v128, %v125
    %v132 = vsub.f32 %v118, %v70
    %v133 = vsel %vm117, %v132, %v118
    %v134 = vadd.f32 %v133, %v131
    %v135 = vsel %vm117, 1.0, %v114
    %v136 = vmul.f32 %v135, %v134
    %v137 = vld [vmem:[#allocation2] sm:$0x3]
    %v138 = vadd.f32 %v137, %v136
    %139 = vst [vmem:[#allocation2] sm:$0x3] %v138
    // Predicated region
    $region30: #{tpu_custom_call.1} parent=1 // pred_check
      %p140 = pneg %p65
    $region31: #{tpu_custom_call.1} parent=1 // pred_check_branch
      %142 = sbr.rel (%p140) target = $region33
    $region32: #{tpu_custom_call.1} parent=1 // pred_region
      %v143 = vld [vmem:[#allocation2] sm:$0x3]
      %v144 = vsel %vm81, %v143, 0.0
      %145 = vadd.xlane.f32.xlu0 %v144
      %v146 = vpop.xlane.xlu0 %145
      %v147 = vrot.slane %v146, 4
      %v148 = vadd.f32 %v146, %v147
      %v149 = vrot.slane %v148, 2
      %v150 = vadd.f32 %v148, %v149
      %v151 = vrot.slane %v150, 1
      %v152 = vadd.f32 %v150, %v151
      %s153 = vtos %v152
      %v154 = vstv %s153
      %155 = vst [vmem:[#allocation9] sm:$0xff] %v154
    $region33: #{tpu_custom_call.1} parent=1 // pred_fallthru
      _
    // Predicated region
    $region34: #{tpu_custom_call.1} parent=1 // pred_check
      _
    $region35: #{tpu_custom_call.1} parent=1 // pred_check_branch
      %157 = sbr.rel (0) target = $region37
    $region36: #{tpu_custom_call.1} parent=1 // pred_region
      %159 = vsyncadd [#allocation5], 0
      %s161 = sshll.u32 [#allocation9], 4
      %s162 = int_to_ptr.vmem [resolvable:$true] %s161
      %s163 = sshll.u32 %s3, 4
      %s164 = int_to_ptr.hbm [resolvable:$true] %s163
      %166 = dma.vmem_to_hbm [thread:$0]  %s162, 128, %s164, [#allocation5]
    $region37: #{tpu_custom_call.1} parent=1 // pred_fallthru
      _
    // Predicated region
    $region38: #{tpu_custom_call.1} parent=1 // pred_check
      _
    $region39: #{tpu_custom_call.1} parent=1 // pred_check_branch
      %168 = sbr.rel (0) target = $region41
    $region40: #{tpu_custom_call.1} parent=1 // pred_region
      %170 = dma.done [#allocation5], 128
    $region41: #{tpu_custom_call.1} parent=1 // pred_fallthru
      _
    %171 = vsyncpa [#allocation4], 1
    %172 = vsyncpa [#allocation7], 1
    %173 = vsyncpa [#allocation5], 1

</llo_original>
